<compile_context>
chip_gen: v7x
topology: tpu7x:2x2x1
jax: 0.10.0
libtpu: 0.0.40
codegen_flags: <defaults>
</compile_context>

<pallas_src>
import jax
import jax.numpy as jnp
from jax import lax
from jax.experimental import pallas as pl
from jax.experimental.pallas import tpu as pltpu


def _vmem_capacity_bytes():
    """Best-effort physical VMEM capacity query (falls back to v7x's 64 MiB)."""
    try:
        info = pltpu.get_tpu_info()
        cap = getattr(info, "vmem_capacity_bytes", None)
        if cap:
            return int(cap)
    except Exception:
        pass
    return 64 * 1024 * 1024


def _make_grad_l1_kernel(mode, n_rows, tb, n_inner, needs_mask):
    """Kernel accumulating sum|gx1-gx2| and sum|gy1-gy2| over a (G, n_inner) grid.

    Inputs are (tb, H, W) blocks of the (N*C, H, W) views of both images.
    Grid axis 0 is 'parallel' (megacore split over row-blocks), axis 1 is the
    sequential reduction over this core's row-blocks.
    """

    def kernel(a_ref, b_ref, sx_ref, sy_ref, accx_ref, accy_ref):
        c = pl.program_id(0)
        j = pl.program_id(1)

        @pl.when(j == 0)
        def _():
            accx_ref[...] = jnp.zeros_like(accx_ref)
            accy_ref[...] = jnp.zeros_like(accy_ref)

        # Cast inside the kernel: no extra HBM pass in the wrapper.
        a = a_ref[...].astype(jnp.float32)
        b = b_ref[...].astype(jnp.float32)

        def row_valid():
            # Gradients never mix rows along the leading axis, so zeroed rows
            # contribute exactly 0 to both sums.
            row0 = (c * n_inner + j) * tb
            row = row0 + lax.broadcasted_iota(jnp.int32, (tb, 1, 1), 0)
            return row < n_rows

        if mode == "gradient":
            # |gx1 - gx2| == |grad_x(img1 - img2)|: fold the difference first.
            d = a - b
            if needs_mask:
                d = jnp.where(row_valid(), d, 0.0)
            gx = jnp.abs(d[:, 1:, :] - d[:, :-1, :])      # (tb, H-1, W)
            gy = jnp.abs(d[:, :, 1:] - d[:, :, :-1])      # (tb, H, W-1)
        else:  # 'edge' (unmasked): |.| of each gradient before the L1 diff.
            if needs_mask:
                valid = row_valid()
                a = jnp.where(valid, a, 0.0)
                b = jnp.where(valid, b, 0.0)
            gxa = jnp.abs(a[:, 1:, :] - a[:, :-1, :])
            gya = jnp.abs(a[:, :, 1:] - a[:, :, :-1])
            gxb = jnp.abs(b[:, 1:, :] - b[:, :-1, :])
            gyb = jnp.abs(b[:, :, 1:] - b[:, :, :-1])
            gx = jnp.abs(gxa - gxb)
            gy = jnp.abs(gya - gyb)

        # Per-step: reduce only the leading (row) axis -- pure VALU adds of
        # slabs -- then the sublane axis; the lane axis stays resident in the
        # accumulators.  The expensive cross-lane reduce happens once at the end.
        px = jnp.sum(gx, axis=0, keepdims=True)           # (1, H-1, W)
        py = jnp.sum(gy, axis=0, keepdims=True)           # (1, H,   W-1)
        accx_ref[...] += jnp.sum(px, axis=1, keepdims=True)   # (1, 1, W)
        accy_ref[...] += jnp.sum(py, axis=1, keepdims=True)   # (1, 1, W-1)

        @pl.when(j == n_inner - 1)
        def _():
            sx_ref[...] = jnp.sum(accx_ref[...], axis=2, keepdims=True)
            sy_ref[...] = jnp.sum(accy_ref[...], axis=2, keepdims=True)

    return kernel


def _grad_l1_sums(img1, img2, mode):
    """Returns (sum|gx1-gx2|, sum|gy1-gy2|) via a single Pallas kernel."""
    assert img1.shape == img2.shape, (img1.shape, img2.shape)
    N, C, H, W = img1.shape
    assert H >= 2 and W >= 2, "RetinaLoss needs H >= 2 and W >= 2 (empty gradient otherwise)"
    B = N * C
    a = img1.reshape(B, H, W)
    b = img2.reshape(B, H, W)

    itemsize = a.dtype.itemsize
    slab_bytes = H * W * itemsize

    # Generation-aware VMEM budget: big tiles on 128-MiB parts (v5e/v6e),
    # capped on v7x (64 MiB per TensorCore).
    vmem_cap = _vmem_capacity_bytes()
    if vmem_cap >= 100 * 1024 * 1024:
        block_budget = 6 * 1024 * 1024
        vmem_limit = 64 * 1024 * 1024
    else:
        block_budget = 4 * 1024 * 1024
        vmem_limit = 48 * 1024 * 1024

    tb_fit = int(max(1, min(B, block_budget // slab_bytes)))
    # Prefer a block size that divides B so the partial-block mask compiles out.
    tb_div = max(t for t in range(1, tb_fit + 1) if B % t == 0)
    tb = tb_div if (tb_div * 2 >= tb_fit) else tb_fit
    needs_mask = (B % tb) != 0
    nblocks = -(-B // tb)

    # Outer 'parallel' axis so v7x's two TensorCores split the row blocks.
    G = 2 if (nblocks >= 2 and nblocks % 2 == 0) else 1
    n_inner = nblocks // G

    kernel = _make_grad_l1_kernel(mode, B, tb, n_inner, needs_mask)
    out_shape = jax.ShapeDtypeStruct((G, 1, 1), jnp.float32)
    cost = pl.CostEstimate(
        flops=int(10 * a.size),
        transcendentals=0,
        bytes_accessed=int(2 * a.size * itemsize + 8 * G),
    )

    in_map = lambda c, j: (c * n_inner + j, 0, 0)
    out_map = lambda c, j: (c, 0, 0)

    sx, sy = pl.pallas_call(
        kernel,
        out_shape=(out_shape, out_shape),
        grid_spec=pltpu.PrefetchScalarGridSpec(
            num_scalar_prefetch=0,
            grid=(G, n_inner),
            in_specs=[
                pl.BlockSpec((tb, H, W), in_map),
                pl.BlockSpec((tb, H, W), in_map),
            ],
            out_specs=(
                pl.BlockSpec((1, 1, 1), out_map),
                pl.BlockSpec((1, 1, 1), out_map),
            ),
            scratch_shapes=[
                pltpu.VMEM((1, 1, W), jnp.float32),
                pltpu.VMEM((1, 1, W - 1), jnp.float32),
            ],
        ),
        compiler_params=pltpu.CompilerParams(
            dimension_semantics=("parallel", "arbitrary"),
            vmem_limit_bytes=vmem_limit,
        ),
        cost_estimate=cost,
    )(a, b)
    return jnp.sum(sx), jnp.sum(sy)


def retina_loss(img_b, img_r, mode="gradient", mask=None, level=3):
    """JAX/Pallas equivalent of RetinaLoss.forward (default mode='gradient')."""
    if mode == "gradient" or (mode == "edge" and mask is None):
        N, C, H, W = img_b.shape
        sx, sy = _grad_l1_sums(img_b, img_r, mode)
        mean_x = sx / (N * C * (H - 1) * W)
        mean_y = sy / (N * C * H * (W - 1))
        per_level = 0.5 * (mean_x + mean_y)
        # The reference never downsamples in these branches, so every level is
        # identical: one kernel launch, then replicate the level averaging.
        losses = [per_level] * level
        return sum(losses) / float(len(losses))
    elif mode == "edge":
        # TODO(synk): masked edge loss (MaskL1Loss path) not ported to Pallas.
        raise NotImplementedError("edge mode with mask is not implemented")
    elif mode == "exclusion":
        # TODO(synk): exclusion mode (data-dependent eps/NaN branches, sigmoid +
        # AvgPool2d pyramid, host-side print) not ported to Pallas.
        raise NotImplementedError("exclusion mode is not implemented")
    else:
        raise NotImplementedError("mode should in [exclusion/gradient]")


# ----------------------------- pure-JAX reference ----------------------------

def _ref_gradients(img):
    gx = img[:, :, 1:, :] - img[:, :, :-1, :]
    gy = img[:, :, :, 1:] - img[:, :, :, :-1]
    return gx, gy


def _reference_loss(img1, img2, mode="gradient", level=3):
    img1 = img1.astype(jnp.float32)
    img2 = img2.astype(jnp.float32)
    losses = []
    for _ in range(level):
        gx1, gy1 = _ref_gradients(img1)
        gx2, gy2 = _ref_gradients(img2)
        if mode == "edge":
            gx1, gy1, gx2, gy2 = map(jnp.abs, (gx1, gy1, gx2, gy2))
        loss = 0.5 * (jnp.mean(jnp.abs(gx1 - gx2)) + jnp.mean(jnp.abs(gy1 - gy2)))
        losses.append(loss)
    return sum(losses) / float(len(losses))


if __name__ == "__main__":
    key = jax.random.PRNGKey(0)
    k1, k2 = jax.random.split(key)
    # Small NCHW inputs: batch=2, channels=4, spatial 16x16.
    img_b = jax.random.normal(k1, (2, 4, 16, 16), dtype=jnp.float32)
    img_r = jax.random.normal(k2, (2, 4, 16, 16), dtype=jnp.float32)

    loss_g = retina_loss(img_b, img_r)             # default mode='gradient'
    loss_e = retina_loss(img_b, img_r, mode="edge")
    jax.block_until_ready((loss_g, loss_e))

    ref_g = _reference_loss(img_b, img_r, mode="gradient")
    ref_e = _reference_loss(img_b, img_r, mode="edge")
    assert jnp.allclose(loss_g, ref_g, rtol=1e-5, atol=1e-6), (loss_g, ref_g)
    assert jnp.allclose(loss_e, ref_e, rtol=1e-5, atol=1e-6), (loss_e, ref_e)
    print("KERNEL_OK")
</pallas_src>

<mosaic_0001>
module attributes {stable_mosaic.version = 11 : i64} {
  func.func @kernel(%arg0: i32, %arg1: i32, %arg2: memref<8x16x16xf32, #tpu.memory_space<vmem>>, %arg3: memref<8x16x16xf32, #tpu.memory_space<vmem>>, %arg4: memref<1x1x1xf32, #tpu.memory_space<vmem>>, %arg5: memref<1x1x1xf32, #tpu.memory_space<vmem>>, %arg6: memref<1x1x16xf32, #tpu.memory_space<vmem>>, %arg7: memref<1x1x15xf32, #tpu.memory_space<vmem>>) attributes {dimension_semantics = [#tpu.dimension_semantics<parallel>, #tpu.dimension_semantics<arbitrary>], iteration_bounds = array<i64: 1, 1>, scalar_prefetch = 0 : i64, scratch_operands = 2 : i64, tpu.core_type = #tpu.core_type<tc>, window_params = [{transform_indices = @transform_0, window_bounds = array<i64: 8, 16, 16>}, {transform_indices = @transform_1, window_bounds = array<i64: 8, 16, 16>}, {transform_indices = @transform_2, window_bounds = array<i64: 1, 1, 1>}, {transform_indices = @transform_3, window_bounds = array<i64: 1, 1, 1>}]} {
    %c0_i32 = arith.constant 0 : i32
    %0 = arith.cmpi eq, %arg1, %c0_i32 : i32
    %1 = arith.extui %0 : i1 to i32
    %c0_i32_0 = arith.constant 0 : i32
    %2 = arith.cmpi ne, %1, %c0_i32_0 : i32
    scf.if %2 {
      %cst_23 = arith.constant 0.000000e+00 : f32
      %31 = vector.broadcast %cst_23 : f32 to vector<1x1x16xf32>
      %c0_24 = arith.constant 0 : index
      %c0_25 = arith.constant 0 : index
      %c0_26 = arith.constant 0 : index
      %32 = vector.load %arg6[%c0_24, %c0_25, %c0_26] : memref<1x1x16xf32, #tpu.memory_space<vmem>>, vector<1x1x16xf32>
      tpu.vector_store %arg6[%c0_24, %c0_25, %c0_26], %31 {strides = array<i32>} : memref<1x1x16xf32, #tpu.memory_space<vmem>>, vector<1x1x16xf32>,
      %cst_27 = arith.constant 0.000000e+00 : f32
      %33 = vector.broadcast %cst_27 : f32 to vector<1x1x15xf32>
      %c0_28 = arith.constant 0 : index
      %c0_29 = arith.constant 0 : index
      %c0_30 = arith.constant 0 : index
      %34 = vector.load %arg7[%c0_28, %c0_29, %c0_30] : memref<1x1x15xf32, #tpu.memory_space<vmem>>, vector<1x1x15xf32>
      tpu.vector_store %arg7[%c0_28, %c0_29, %c0_30], %33 {strides = array<i32>} : memref<1x1x15xf32, #tpu.memory_space<vmem>>, vector<1x1x15xf32>,
    } else {
    }
    %c0 = arith.constant 0 : index
    %c0_1 = arith.constant 0 : index
    %c0_2 = arith.constant 0 : index
    %3 = vector.load %arg2[%c0, %c0_1, %c0_2] : memref<8x16x16xf32, #tpu.memory_space<vmem>>, vector<8x16x16xf32>
    %c0_3 = arith.constant 0 : index
    %c0_4 = arith.constant 0 : index
    %c0_5 = arith.constant 0 : index
    %4 = vector.load %arg3[%c0_3, %c0_4, %c0_5] : memref<8x16x16xf32, #tpu.memory_space<vmem>>, vector<8x16x16xf32>
    %5 = arith.subf %3, %4 : vector<8x16x16xf32>
    %6 = vector.extract_strided_slice %5 {offsets = [0, 1, 0], sizes = [8, 15, 16], strides = [1, 1, 1]} : vector<8x16x16xf32> to vector<8x15x16xf32>
    %7 = vector.extract_strided_slice %5 {offsets = [0, 0, 0], sizes = [8, 15, 16], strides = [1, 1, 1]} : vector<8x16x16xf32> to vector<8x15x16xf32>
    %8 = arith.subf %6, %7 : vector<8x15x16xf32>
    %9 = math.absf %8 : vector<8x15x16xf32>
    %10 = vector.extract_strided_slice %5 {offsets = [0, 0, 1], sizes = [8, 16, 15], strides = [1, 1, 1]} : vector<8x16x16xf32> to vector<8x16x15xf32>
    %11 = vector.extract_strided_slice %5 {offsets = [0, 0, 0], sizes = [8, 16, 15], strides = [1, 1, 1]} : vector<8x16x16xf32> to vector<8x16x15xf32>
    %12 = arith.subf %10, %11 : vector<8x16x15xf32>
    %13 = math.absf %12 : vector<8x16x15xf32>
    %cst = arith.constant dense<0.000000e+00> : vector<15x16xf32>
    %14 = vector.multi_reduction <add>, %9, %cst [0] : vector<8x15x16xf32> to vector<15x16xf32>
    %15 = vector.shape_cast %14 : vector<15x16xf32> to vector<1x15x16xf32>
    %cst_6 = arith.constant dense<0.000000e+00> : vector<16x15xf32>
    %16 = vector.multi_reduction <add>, %13, %cst_6 [0] : vector<8x16x15xf32> to vector<16x15xf32>
    %17 = vector.shape_cast %16 : vector<16x15xf32> to vector<1x16x15xf32>
    %c0_7 = arith.constant 0 : index
    %c0_8 = arith.constant 0 : index
    %c0_9 = arith.constant 0 : index
    %18 = vector.load %arg6[%c0_7, %c0_8, %c0_9] : memref<1x1x16xf32, #tpu.memory_space<vmem>>, vector<1x1x16xf32>
    %cst_10 = arith.constant dense<0.000000e+00> : vector<1x16xf32>
    %19 = vector.multi_reduction <add>, %15, %cst_10 [1] : vector<1x15x16xf32> to vector<1x16xf32>
    %20 = vector.shape_cast %19 : vector<1x16xf32> to vector<1x1x16xf32>
    %21 = arith.addf %18, %20 : vector<1x1x16xf32>
    %c0_11 = arith.constant 0 : index
    %c0_12 = arith.constant 0 : index
    %c0_13 = arith.constant 0 : index
    %22 = vector.load %arg6[%c0_11, %c0_12, %c0_13] : memref<1x1x16xf32, #tpu.memory_space<vmem>>, vector<1x1x16xf32>
    tpu.vector_store %arg6[%c0_11, %c0_12, %c0_13], %21 {strides = array<i32>} : memref<1x1x16xf32, #tpu.memory_space<vmem>>, vector<1x1x16xf32>,
    %c0_14 = arith.constant 0 : index
    %c0_15 = arith.constant 0 : index
    %c0_16 = arith.constant 0 : index
    %23 = vector.load %arg7[%c0_14, %c0_15, %c0_16] : memref<1x1x15xf32, #tpu.memory_space<vmem>>, vector<1x1x15xf32>
    %cst_17 = arith.constant dense<0.000000e+00> : vector<1x15xf32>
    %24 = vector.multi_reduction <add>, %17, %cst_17 [1] : vector<1x16x15xf32> to vector<1x15xf32>
    %25 = vector.shape_cast %24 : vector<1x15xf32> to vector<1x1x15xf32>
    %26 = arith.addf %23, %25 : vector<1x1x15xf32>
    %c0_18 = arith.constant 0 : index
    %c0_19 = arith.constant 0 : index
    %c0_20 = arith.constant 0 : index
    %27 = vector.load %arg7[%c0_18, %c0_19, %c0_20] : memref<1x1x15xf32, #tpu.memory_space<vmem>>, vector<1x1x15xf32>
    tpu.vector_store %arg7[%c0_18, %c0_19, %c0_20], %26 {strides = array<i32>} : memref<1x1x15xf32, #tpu.memory_space<vmem>>, vector<1x1x15xf32>,
    %c0_i32_21 = arith.constant 0 : i32
    %28 = arith.cmpi eq, %arg1, %c0_i32_21 : i32
    %29 = arith.extui %28 : i1 to i32
    %c0_i32_22 = arith.constant 0 : i32
    %30 = arith.cmpi ne, %29, %c0_i32_22 : i32
    scf.if %30 {
      %c0_23 = arith.constant 0 : index
      %c0_24 = arith.constant 0 : index
      %c0_25 = arith.constant 0 : index
      %31 = vector.load %arg6[%c0_23, %c0_24, %c0_25] : memref<1x1x16xf32, #tpu.memory_space<vmem>>, vector<1x1x16xf32>
      %cst_26 = arith.constant dense<0.000000e+00> : vector<1x1xf32>
      %32 = vector.multi_reduction <add>, %31, %cst_26 [2] : vector<1x1x16xf32> to vector<1x1xf32>
      %33 = vector.shape_cast %32 : vector<1x1xf32> to vector<1x1x1xf32>
      %c0_27 = arith.constant 0 : index
      %c0_28 = arith.constant 0 : index
      %c0_29 = arith.constant 0 : index
      %34 = vector.load %arg4[%c0_27, %c0_28, %c0_29] : memref<1x1x1xf32, #tpu.memory_space<vmem>>, vector<1x1x1xf32>
      tpu.vector_store %arg4[%c0_27, %c0_28, %c0_29], %33 {strides = array<i32>} : memref<1x1x1xf32, #tpu.memory_space<vmem>>, vector<1x1x1xf32>,
      %c0_30 = arith.constant 0 : index
      %c0_31 = arith.constant 0 : index
      %c0_32 = arith.constant 0 : index
      %35 = vector.load %arg7[%c0_30, %c0_31, %c0_32] : memref<1x1x15xf32, #tpu.memory_space<vmem>>, vector<1x1x15xf32>
      %cst_33 = arith.constant dense<0.000000e+00> : vector<1x1xf32>
      %36 = vector.multi_reduction <add>, %35, %cst_33 [2] : vector<1x1x15xf32> to vector<1x1xf32>
      %37 = vector.shape_cast %36 : vector<1x1xf32> to vector<1x1x1xf32>
      %c0_34 = arith.constant 0 : index
      %c0_35 = arith.constant 0 : index
      %c0_36 = arith.constant 0 : index
      %38 = vector.load %arg5[%c0_34, %c0_35, %c0_36] : memref<1x1x1xf32, #tpu.memory_space<vmem>>, vector<1x1x1xf32>
      tpu.vector_store %arg5[%c0_34, %c0_35, %c0_36], %37 {strides = array<i32>} : memref<1x1x1xf32, #tpu.memory_space<vmem>>, vector<1x1x1xf32>,
    } else {
    }
    return
  }
  func.func @transform_0(%arg0: i32, %arg1: i32) -> (i32, i32, i32) {
    %c1_i32 = arith.constant 1 : i32
    %0 = arith.muli %arg0, %c1_i32 : i32
    %1 = arith.addi %0, %arg1 : i32
    %c0_i32 = arith.constant 0 : i32
    %c0_i32_0 = arith.constant 0 : i32
    %c0_i32_1 = arith.constant 0 : i32
    return %1, %c0_i32, %c0_i32_0 : i32, i32, i32
  }
  func.func @transform_1(%arg0: i32, %arg1: i32) -> (i32, i32, i32) {
    %c1_i32 = arith.constant 1 : i32
    %0 = arith.muli %arg0, %c1_i32 : i32
    %1 = arith.addi %0, %arg1 : i32
    %c0_i32 = arith.constant 0 : i32
    %c0_i32_0 = arith.constant 0 : i32
    %c0_i32_1 = arith.constant 0 : i32
    return %1, %c0_i32, %c0_i32_0 : i32, i32, i32
  }
  func.func @transform_2(%arg0: i32, %arg1: i32) -> (i32, i32, i32) {
    %c0_i32 = arith.constant 0 : i32
    %c0_i32_0 = arith.constant 0 : i32
    %c0_i32_1 = arith.constant 0 : i32
    return %arg0, %c0_i32, %c0_i32_0 : i32, i32, i32
  }
  func.func @transform_3(%arg0: i32, %arg1: i32) -> (i32, i32, i32) {
    %c0_i32 = arith.constant 0 : i32
    %c0_i32_0 = arith.constant 0 : i32
    %c0_i32_1 = arith.constant 0 : i32
    return %arg0, %c0_i32, %c0_i32_0 : i32, i32, i32
  }
}

</mosaic_0001>

<llo_original>
// kernel: tpu_custom_call.1
$region0: #{tpu_custom_call.1}
  #allocation0 [shape = 'u32[]', space=smem, size = 0x4, offset = 0x4, fixed_abs, tag = 'smem constant byte address 0x4 - core index']
  #allocation1 [shape = 'u32[144,128]{1,0:T(1,128)}', space=vmem, size = 0x12000, scoped, tag = 'internal scratch']
  #allocation2 [shape = 'f32[1,1,16]{2,1,0:T(1,128)}', space=vmem, size = 0x200, scoped, tag = 'scratch operand']
  #allocation3 [shape = 'f32[1,1,15]{2,1,0:T(1,128)}', space=vmem, size = 0x200, scoped, tag = 'scratch operand']
  %s0 = inlined_call_operand.hbm [shape: f32[8,16,16], index: 0, kind: input, shape index: {}]
  %s1 = inlined_call_operand.hbm [shape: f32[8,16,16], index: 1, kind: input, shape index: {}]
  %s2 = inlined_call_operand.hbm [shape: f32[1,1,1], index: 2, kind: output, shape index: {0}]
  %s3 = inlined_call_operand.hbm [shape: f32[1,1,1], index: 3, kind: output, shape index: {1}]
  %4 = xla_tuple %s2, %s3
  %s5 = sld [smem:[#allocation0]]
  $region42: #{tpu_custom_call.1} parent=0
    _
  %s7 = ssub.s32 1, %s5
  %s8 = scalar_select 0, %s7, %s5
  $region1: #{tpu_custom_call.1} parent=0
    #allocation4 [shape = 'u8[65536]{0}', space=vmem, size = 0x10000, scoped, tag = 'input window, operand 0, single buffered']
    #allocation5 [shape = 's32[1]{0}', space=sflag, size = 0x4, scoped, tag = 'scoped memory for tpu_custom_call.1']
    #allocation6 [shape = 's32[1]{0}', space=sflag, size = 0x4, scoped, tag = 'scoped memory for tpu_custom_call.1']
    #allocation7 [shape = 'u8[65536]{0}', space=vmem, size = 0x10000, scoped, tag = 'input window, operand 1, single buffered']
    #allocation8 [shape = 's32[1]{0}', space=sflag, size = 0x4, scoped, tag = 'scoped memory for tpu_custom_call.1']
    #allocation9 [shape = 'u8[512]{0}', space=vmem, size = 0x400, scoped, tag = 'output window, operand 0, single buffered']
    #allocation10 [shape = 'u8[512]{0}', space=vmem, size = 0x400, scoped, tag = 'output window, operand 1, single buffered']
    #allocation11 [shape = 's32[1]{0}', space=sflag, size = 0x4, scoped, tag = 'scoped memory for tpu_custom_call.1']
    %9 = vsyncpa [#allocation5], 0
    %10 = vsyncpa [#allocation8], 0
    %11 = vsyncpa [#allocation6], 0
    %12 = vsyncpa [#allocation11], 0
    // Predicated region
    $region2: #{tpu_custom_call.1} parent=1 // pred_check
      _
    $region3: #{tpu_custom_call.1} parent=1 // pred_check_branch
      %14 = sbr.rel (0) target = $region5
    $region4: #{tpu_custom_call.1} parent=1 // pred_region
      %s15 = sadd.s32 0, 0
      %s16 = smul.u32 8, %s15
      %s18 = ssub.s32 2048, 2048
      %19 = vsyncadd [#allocation5], %s18
      %s20 = smul.addr %s16, 2
      %s21 = smul.addr %s20, 128
      %s22 = scalar_lea.hbm %s0, %s21
      %s23 = sshll.u32 [#allocation4], 4
      %s24 = int_to_ptr.vmem [resolvable:$true] %s23
      %29 = dma.hbm_to_vmem [thread:$0]  %s22, 2048, %s24, [#allocation5], 128, 128, 8
    $region5: #{tpu_custom_call.1} parent=1 // pred_fallthru
      _
    // Predicated region
    $region6: #{tpu_custom_call.1} parent=1 // pred_check
      _
    $region7: #{tpu_custom_call.1} parent=1 // pred_check_branch
      %31 = sbr.rel (0) target = $region9
    $region8: #{tpu_custom_call.1} parent=1 // pred_region
      %s32 = sadd.s32 0, 0
      %s33 = smul.u32 8, %s32
      %s35 = ssub.s32 2048, 2048
      %36 = vsyncadd [#allocation8], %s35
      %s37 = smul.addr %s33, 2
      %s38 = smul.addr %s37, 128
      %s39 = scalar_lea.hbm %s1, %s38
      %s40 = sshll.u32 [#allocation7], 4
      %s41 = int_to_ptr.vmem [resolvable:$true] %s40
      %46 = dma.hbm_to_vmem [thread:$0]  %s39, 2048, %s41, [#allocation8], 128, 128, 8
    $region9: #{tpu_custom_call.1} parent=1 // pred_fallthru
      _
    // Predicated region
    $region10: #{tpu_custom_call.1} parent=1 // pred_check
      _
    $region11: #{tpu_custom_call.1} parent=1 // pred_check_branch
      %48 = sbr.rel (0) target = $region13
    $region12: #{tpu_custom_call.1} parent=1 // pred_region
      %49 = dma.done [#allocation5], 2048
    $region13: #{tpu_custom_call.1} parent=1 // pred_fallthru
      _
    // Predicated region
    $region14: #{tpu_custom_call.1} parent=1 // pred_check
      _
    $region15: #{tpu_custom_call.1} parent=1 // pred_check_branch
      %51 = sbr.rel (0) target = $region17
    $region16: #{tpu_custom_call.1} parent=1 // pred_region
      %52 = dma.done [#allocation8], 2048
    $region17: #{tpu_custom_call.1} parent=1 // pred_fallthru
      _
    %s53 = sadd.s32 0, 0
    %s54 = smul.u32 8, %s53
    %s55 = sadd.s32 0, 0
    %s56 = smul.u32 8, %s55
    %p57 = scmp.eq.s32.totalorder 0, 0
    // Predicated region
    $region18: #{tpu_custom_call.1} parent=1 // pred_check
      %p58 = pneg %p57
    $region19: #{tpu_custom_call.1} parent=1 // pred_check_branch
      %60 = sbr.rel (%p58) target = $region21
    $region20: #{tpu_custom_call.1} parent=1 // pred_region
      %vm61 = vcmask 122880
      %62 = vst.msk [vmem:[#allocation2] sm:$0x1] %vm61, 0.0
      %vm63 = vcmask 114688
      %64 = vst.msk [vmem:[#allocation3] sm:$0x1] %vm63, 0.0
    $region21: #{tpu_custom_call.1} parent=1 // pred_fallthru
      _
    %v65 = vld [vmem:[#allocation4] sm:$0xff]
    %v66 = vld [vmem:[#allocation4 + $0x8] sm:$0xff]
    %v67 = vld [vmem:[#allocation4 + $0x10] sm:$0xff]
    %v68 = vld [vmem:[#allocation4 + $0x18] sm:$0xff]
    %v69 = vld [vmem:[#allocation4 + $0x20] sm:$0xff]
    %v70 = vld [vmem:[#allocation4 + $0x28] sm:$0xff]
    %v71 = vld [vmem:[#allocation4 + $0x30] sm:$0xff]
    %v72 = vld [vmem:[#allocation4 + $0x38] sm:$0xff]
    %v73 = vld [vmem:[#allocation4 + $0x40] sm:$0xff]
    %v74 = vld [vmem:[#allocation4 + $0x48] sm:$0xff]
    %v75 = vld [vmem:[#allocation4 + $0x50] sm:$0xff]
    %v76 = vld [vmem:[#allocation4 + $0x58] sm:$0xff]
    %v77 = vld [vmem:[#allocation4 + $0x60] sm:$0xff]
    %v78 = vld [vmem:[#allocation4 + $0x68] sm:$0xff]
    %v79 = vld [vmem:[#allocation4 + $0x70] sm:$0xff]
    %v80 = vld [vmem:[#allocation4 + $0x78] sm:$0xff]
    %v81 = vld [vmem:[#allocation7] sm:$0xff]
    %v82 = vld [vmem:[#allocation7 + $0x8] sm:$0xff]
    %v83 = vld [vmem:[#allocation7 + $0x10] sm:$0xff]
    %v84 = vld [vmem:[#allocation7 + $0x18] sm:$0xff]
    %v85 = vld [vmem:[#allocation7 + $0x20] sm:$0xff]
    %v86 = vld [vmem:[#allocation7 + $0x28] sm:$0xff]
    %v87 = vld [vmem:[#allocation7 + $0x30] sm:$0xff]
    %v88 = vld [vmem:[#allocation7 + $0x38] sm:$0xff]
    %v89 = vld [vmem:[#allocation7 + $0x40] sm:$0xff]
    %v90 = vld [vmem:[#allocation7 + $0x48] sm:$0xff]
    %v91 = vld [vmem:[#allocation7 + $0x50] sm:$0xff]
    %v92 = vld [vmem:[#allocation7 + $0x58] sm:$0xff]
    %v93 = vld [vmem:[#allocation7 + $0x60] sm:$0xff]
    %v94 = vld [vmem:[#allocation7 + $0x68] sm:$0xff]
    %v95 = vld [vmem:[#allocation7 + $0x70] sm:$0xff]
    %v96 = vld [vmem:[#allocation7 + $0x78] sm:$0xff]
    %v97 = vsub.f32 %v65, %v81
    %v98 = vsub.f32 %v66, %v82
    %v99 = vsub.f32 %v67, %v83
    %v100 = vsub.f32 %v68, %v84
    %v101 = vsub.f32 %v69, %v85
    %v102 = vsub.f32 %v70, %v86
    %v103 = vsub.f32 %v71, %v87
    %v104 = vsub.f32 %v72, %v88
    %v105 = vsub.f32 %v73, %v89
    %v106 = vsub.f32 %v74, %v90
    %v107 = vsub.f32 %v75, %v91
    %v108 = vsub.f32 %v76, %v92
    %v109 = vsub.f32 %v77, %v93
    %v110 = vsub.f32 %v78, %v94
    %v111 = vsub.f32 %v79, %v95
    %v112 = vsub.f32 %v80, %v96
    %vm129 = vcmask 1040384
    %v130 = vrot.slane %v97, 7
    %v131 = vrot.slane %v98, 7
    %v132 = vsel %vm129, %v130, %v131
    %v133 = vrot.slane %v99, 7
    %v134 = vrot.slane %v100, 7
    %v135 = vsel %vm129, %v133, %v134
    %v136 = vrot.slane %v101, 7
    %v137 = vrot.slane %v102, 7
    %v138 = vsel %vm129, %v136, %v137
    %v139 = vrot.slane %v103, 7
    %v140 = vrot.slane %v104, 7
    %v141 = vsel %vm129, %v139, %v140
    %v142 = vrot.slane %v105, 7
    %v143 = vrot.slane %v106, 7
    %v144 = vsel %vm129, %v142, %v143
    %v145 = vrot.slane %v107, 7
    %v146 = vrot.slane %v108, 7
    %v147 = vsel %vm129, %v145, %v146
    %v148 = vrot.slane %v109, 7
    %v149 = vrot.slane %v110, 7
    %v150 = vsel %vm129, %v148, %v149
    %v151 = vrot.slane %v111, 7
    %v152 = vrot.slane %v112, 7
    %v153 = vsel %vm129, %v151, %v152
    %v170 = vsub.f32 %v97, %v130
    %v171 = vsub.f32 %v98, %v132
    %v172 = vsub.f32 %v99, %v133
    %v173 = vsub.f32 %v100, %v135
    %v174 = vsub.f32 %v101, %v136
    %v175 = vsub.f32 %v102, %v138
    %v176 = vsub.f32 %v103, %v139
    %v177 = vsub.f32 %v104, %v141
    %v178 = vsub.f32 %v105, %v142
    %v179 = vsub.f32 %v106, %v144
    %v180 = vsub.f32 %v107, %v145
    %v181 = vsub.f32 %v108, %v147
    %v182 = vsub.f32 %v109, %v148
    %v183 = vsub.f32 %v110, %v150
    %v184 = vsub.f32 %v111, %v151
    %v185 = vsub.f32 %v112, %v153
    %v186 = vand.u32 2147483647, %v170
    %v187 = vand.u32 2147483647, %v171
    %v188 = vand.u32 2147483647, %v172
    %v189 = vand.u32 2147483647, %v173
    %v190 = vand.u32 2147483647, %v174
    %v191 = vand.u32 2147483647, %v175
    %v192 = vand.u32 2147483647, %v176
    %v193 = vand.u32 2147483647, %v177
    %v194 = vand.u32 2147483647, %v178
    %v195 = vand.u32 2147483647, %v179
    %v196 = vand.u32 2147483647, %v180
    %v197 = vand.u32 2147483647, %v181
    %v198 = vand.u32 2147483647, %v182
    %v199 = vand.u32 2147483647, %v183
    %v200 = vand.u32 2147483647, %v184
    %v201 = vand.u32 2147483647, %v185
    %202 = vrot.lane.b32.xlu0 %v97, 1
    %v203 = vpop.permute.xlu0 %202
    %204 = vrot.lane.b32.xlu0 %v98, 1
    %v205 = vpop.permute.xlu0 %204
    %206 = vrot.lane.b32.xlu0 %v99, 1
    %v207 = vpop.permute.xlu0 %206
    %208 = vrot.lane.b32.xlu0 %v100, 1
    %v209 = vpop.permute.xlu0 %208
    %210 = vrot.lane.b32.xlu0 %v101, 1
    %v211 = vpop.permute.xlu0 %210
    %212 = vrot.lane.b32.xlu0 %v102, 1
    %v213 = vpop.permute.xlu0 %212
    %214 = vrot.lane.b32.xlu0 %v103, 1
    %v215 = vpop.permute.xlu0 %214
    %216 = vrot.lane.b32.xlu0 %v104, 1
    %v217 = vpop.permute.xlu0 %216
    %218 = vrot.lane.b32.xlu0 %v105, 1
    %v219 = vpop.permute.xlu0 %218
    %220 = vrot.lane.b32.xlu0 %v106, 1
    %v221 = vpop.permute.xlu0 %220
    %222 = vrot.lane.b32.xlu0 %v107, 1
    %v223 = vpop.permute.xlu0 %222
    %224 = vrot.lane.b32.xlu0 %v108, 1
    %v225 = vpop.permute.xlu0 %224
    %226 = vrot.lane.b32.xlu0 %v109, 1
    %v227 = vpop.permute.xlu0 %226
    %228 = vrot.lane.b32.xlu0 %v110, 1
    %v229 = vpop.permute.xlu0 %228
    %230 = vrot.lane.b32.xlu0 %v111, 1
    %v231 = vpop.permute.xlu0 %230
    %232 = vrot.lane.b32.xlu0 %v112, 1
    %v233 = vpop.permute.xlu0 %232
    %v250 = vsub.f32 %v97, %v203
    %v251 = vsub.f32 %v98, %v205
    %v252 = vsub.f32 %v99, %v207
    %v253 = vsub.f32 %v100, %v209
    %v254 = vsub.f32 %v101, %v211
    %v255 = vsub.f32 %v102, %v213
    %v256 = vsub.f32 %v103, %v215
    %v257 = vsub.f32 %v104, %v217
    %v258 = vsub.f32 %v105, %v219
    %v259 = vsub.f32 %v106, %v221
    %v260 = vsub.f32 %v107, %v223
    %v261 = vsub.f32 %v108, %v225
    %v262 = vsub.f32 %v109, %v227
    %v263 = vsub.f32 %v110, %v229
    %v264 = vsub.f32 %v111, %v231
    %v265 = vsub.f32 %v112, %v233
    %v266 = vand.u32 2147483647, %v250
    %v267 = vand.u32 2147483647, %v251
    %v268 = vand.u32 2147483647, %v252
    %v269 = vand.u32 2147483647, %v253
    %v270 = vand.u32 2147483647, %v254
    %v271 = vand.u32 2147483647, %v255
    %v272 = vand.u32 2147483647, %v256
    %v273 = vand.u32 2147483647, %v257
    %v274 = vand.u32 2147483647, %v258
    %v275 = vand.u32 2147483647, %v259
    %v276 = vand.u32 2147483647, %v260
    %v277 = vand.u32 2147483647, %v261
    %v278 = vand.u32 2147483647, %v262
    %v279 = vand.u32 2147483647, %v263
    %v280 = vand.u32 2147483647, %v264
    %v281 = vand.u32 2147483647, %v265
    %vm282 = vcmask 130049
    %v283 = vsel %vm282, %v186, 0.0
    %v284 = vsel %vm282, %v188, 0.0
    %v285 = vadd.f32 %v283, %v284
    %v286 = vsel %vm282, %v190, 0.0
    %v287 = vadd.f32 %v285, %v286
    %v288 = vsel %vm282, %v192, 0.0
    %v289 = vadd.f32 %v287, %v288
    %v290 = vsel %vm282, %v194, 0.0
    %v291 = vadd.f32 %v289, %v290
    %v292 = vsel %vm282, %v196, 0.0
    %v293 = vadd.f32 %v291, %v292
    %v294 = vsel %vm282, %v198, 0.0
    %v295 = vadd.f32 %v293, %v294
    %v296 = vsel %vm282, %v200, 0.0
    %v297 = vadd.f32 %v295, %v296
    %vm298 = vcmask 130048
    %v299 = vsel %vm298, %v187, 0.0
    %v300 = vsel %vm298, %v189, 0.0
    %v301 = vadd.f32 %v299, %v300
    %v302 = vsel %vm298, %v191, 0.0
    %v303 = vadd.f32 %v301, %v302
    %v304 = vsel %vm298, %v193, 0.0
    %v305 = vadd.f32 %v303, %v304
    %v306 = vsel %vm298, %v195, 0.0
    %v307 = vadd.f32 %v305, %v306
    %v308 = vsel %vm298, %v197, 0.0
    %v309 = vadd.f32 %v307, %v308
    %v310 = vsel %vm298, %v199, 0.0
    %v311 = vadd.f32 %v309, %v310
    %v312 = vsel %vm298, %v201, 0.0
    %v313 = vadd.f32 %v311, %v312
    %vm314 = vcmask 130056
    %v315 = vsel %vm314, %v266, 0.0
    %v316 = vsel %vm314, %v268, 0.0
    %v317 = vadd.f32 %v315, %v316
    %v318 = vsel %vm314, %v270, 0.0
    %v319 = vadd.f32 %v317, %v318
    %v320 = vsel %vm314, %v272, 0.0
    %v321 = vadd.f32 %v319, %v320
    %v322 = vsel %vm314, %v274, 0.0
    %v323 = vadd.f32 %v321, %v322
    %v324 = vsel %vm314, %v276, 0.0
    %v325 = vadd.f32 %v323, %v324
    %v326 = vsel %vm314, %v278, 0.0
    %v327 = vadd.f32 %v325, %v326
    %v328 = vsel %vm314, %v280, 0.0
    %v329 = vadd.f32 %v327, %v328
    %v330 = vsel %vm314, %v267, 0.0
    %v331 = vsel %vm314, %v269, 0.0
    %v332 = vadd.f32 %v330, %v331
    %v333 = vsel %vm314, %v271, 0.0
    %v334 = vadd.f32 %v332, %v333
    %v335 = vsel %vm314, %v273, 0.0
    %v336 = vadd.f32 %v334, %v335
    %v337 = vsel %vm314, %v275, 0.0
    %v338 = vadd.f32 %v336, %v337
    %v339 = vsel %vm314, %v277, 0.0
    %v340 = vadd.f32 %v338, %v339
    %v341 = vsel %vm314, %v279, 0.0
    %v342 = vadd.f32 %v340, %v341
    %v343 = vsel %vm314, %v281, 0.0
    %v344 = vadd.f32 %v342, %v343
    %v345 = vld [vmem:[#allocation2] sm:$0x1]
    %vm348 = vcmask 1046528
    %v349 = vrot.slane %v297, 1
    %v350 = vrot.slane %v313, 1
    %v351 = vsel %vm348, %v349, %v350
    %v354 = vsel %vm298, %v351, 0.0
    %vm355 = vcmask 129024
    %v356 = vsel %vm355, %v350, 0.0
    %v357 = vadd.f32 %v354, %v356
    %v358 = vrot.slane %v357, 4
    %v359 = vadd.f32 %v357, %v358
    %v360 = vrot.slane %v359, 2
    %v361 = vadd.f32 %v359, %v360
    %v362 = vrot.slane %v361, 1
    %v363 = vadd.f32 %v361, %v362
    %v364 = vadd.f32 %v345, %v363
    %vm365 = vcmask 122880
    %366 = vst.msk [vmem:[#allocation2] sm:$0x1] %vm365, %v364
    %v367 = vld [vmem:[#allocation3] sm:$0x1]
    %v368 = vsel %vm314, %v329, 0.0
    %v369 = vsel %vm314, %v344, 0.0
    %v370 = vadd.f32 %v368, %v369
    %v371 = vrot.slane %v370, 4
    %v372 = vadd.f32 %v370, %v371
    %v373 = vrot.slane %v372, 2
    %v374 = vadd.f32 %v372, %v373
    %v375 = vrot.slane %v374, 1
    %v376 = vadd.f32 %v374, %v375
    %v379 = vunpack.c.l.s4 1966171168
    %v380 = vunpack.c.0.s8 %v379
    %v381 = vlaneseq
    %v382 = vshrl.u32 %v381, 7
    %v383 = vsub.s32 %v380, %v382
    %v384 = vrot.slane %v376, %v383
    %v386 = vunpack.c.l.s4 1966171168
    %v387 = vunpack.c.0.s8 %v386
    %v388 = vlaneseq
    %v389 = vshrl.u32 %v388, 7
    %v390 = vsub.s32 %v387, %v389
    %v391 = vrot.slane %v384, %v390
    %392 = vrot.lane.b32.xlu0 %v391, 127
    %v393 = vpop.permute.xlu0 %392
    %v395 = vadd.f32 %v367, %v393
    %vm396 = vcmask 114688
    %397 = vst.msk [vmem:[#allocation3] sm:$0x1] %vm396, %v395
    // Predicated region
    $region22: #{tpu_custom_call.1} parent=1 // pred_check
      %p398 = pneg %p57
    $region23: #{tpu_custom_call.1} parent=1 // pred_check_branch
      %400 = sbr.rel (%p398) target = $region25
    $region24: #{tpu_custom_call.1} parent=1 // pred_region
      %v401 = vld [vmem:[#allocation2] sm:$0x1]
      %v402 = vsel %vm365, %v401, 0.0
      %403 = vadd.xlane.f32.xlu0 %v402
      %v404 = vpop.xlane.xlu0 %403
      %vm405 = vcmask 0
      %406 = vst.msk [vmem:[#allocation9] sm:$0x1] %vm405, %v404
      %v407 = vld [vmem:[#allocation3] sm:$0x1]
      %v408 = vsel %vm396, %v407, 0.0
      %409 = vadd.xlane.f32.xlu0 %v408
      %v410 = vpop.xlane.xlu0 %409
      %411 = vst.msk [vmem:[#allocation10] sm:$0x1] %vm405, %v410
    $region25: #{tpu_custom_call.1} parent=1 // pred_fallthru
      _
    // Predicated region
    $region26: #{tpu_custom_call.1} parent=1 // pred_check
      _
    $region27: #{tpu_custom_call.1} parent=1 // pred_check_branch
      %413 = sbr.rel (0) target = $region29
    $region28: #{tpu_custom_call.1} parent=1 // pred_region
      %s415 = ssub.s32 16, 16
      %416 = vsyncadd [#allocation6], %s415
      %s418 = sshll.u32 [#allocation9], 4
      %s419 = int_to_ptr.vmem [resolvable:$true] %s418
      %421 = dma.vmem_to_hbm [thread:$0]  %s419, 16, %s2, [#allocation6]
    $region29: #{tpu_custom_call.1} parent=1 // pred_fallthru
      _
    // Predicated region
    $region30: #{tpu_custom_call.1} parent=1 // pred_check
      _
    $region31: #{tpu_custom_call.1} parent=1 // pred_check_branch
      %423 = sbr.rel (0) target = $region33
    $region32: #{tpu_custom_call.1} parent=1 // pred_region
      %s425 = ssub.s32 16, 16
      %426 = vsyncadd [#allocation11], %s425
      %s428 = sshll.u32 [#allocation10], 4
      %s429 = int_to_ptr.vmem [resolvable:$true] %s428
      %431 = dma.vmem_to_hbm [thread:$0]  %s429, 16, %s3, [#allocation11]
    $region33: #{tpu_custom_call.1} parent=1 // pred_fallthru
      _
    // Predicated region
    $region34: #{tpu_custom_call.1} parent=1 // pred_check
      _
    $region35: #{tpu_custom_call.1} parent=1 // pred_check_branch
      %433 = sbr.rel (0) target = $region37
    $region36: #{tpu_custom_call.1} parent=1 // pred_region
      %434 = dma.done [#allocation6], 16
    $region37: #{tpu_custom_call.1} parent=1 // pred_fallthru
      _
    // Predicated region
    $region38: #{tpu_custom_call.1} parent=1 // pred_check
      _
    $region39: #{tpu_custom_call.1} parent=1 // pred_check_branch
      %436 = sbr.rel (0) target = $region41
    $region40: #{tpu_custom_call.1} parent=1 // pred_region
      %437 = dma.done [#allocation11], 16
    $region41: #{tpu_custom_call.1} parent=1 // pred_fallthru
      _
    %438 = vsyncpa [#allocation5], 1
    %439 = vsyncpa [#allocation8], 1
    %440 = vsyncpa [#allocation6], 1
    %441 = vsyncpa [#allocation11], 1

</llo_original>
